<compile_context>
chip_gen: v5e
topology: v5e:2x2
jax: 0.10.0
libtpu: 0.0.40
codegen_flags: <defaults>
</compile_context>

<pallas_src>
import numpy as np
import jax
import jax.numpy as jnp
from jax.experimental import pallas as pl
from jax.experimental.pallas import tpu as pltpu


# ----------------------------- host-side operators -----------------------------

def _adaptive_pool_matrix(out_size, in_size):
    """A[i, h] = 1/|region_i| if h in region_i else 0 (PyTorch AdaptiveAvgPool regions)."""
    A = np.zeros((out_size, in_size), dtype=np.float32)
    for i in range(out_size):
        start = (i * in_size) // out_size
        end = -((-(i + 1) * in_size) // out_size)     # ceil((i+1)*in/out)
        A[i, start:end] = 1.0 / float(end - start)
    return A


def _bilinear_matrix(out_size, in_size):
    """U[o, i]: 1-D bilinear interpolation weights, align_corners=True (in_size -> out_size)."""
    U = np.zeros((out_size, in_size), dtype=np.float32)
    if in_size == 1 or out_size == 1:
        U[:, 0] = 1.0
        return U
    scale = (in_size - 1) / (out_size - 1)
    for o in range(out_size):
        src = o * scale
        i0 = min(int(np.floor(src)), in_size - 1)
        i1 = min(i0 + 1, in_size - 1)
        frac = src - i0
        U[o, i0] += 1.0 - frac
        U[o, i1] += frac
    return U


def _choose_batch_tile(B, bytes_per_batch, target_bytes=2 << 20, max_bt=8):
    """Largest divisor of B (<= max_bt) whose x+out block fits target_bytes, keeping
    >= 2 grid steps when B >= 2 so both v7x TensorCores get work."""
    best = 1
    for d in range(1, min(B, max_bt) + 1):
        if B % d:
            continue
        if d * bytes_per_batch > target_bytes:
            break
        if B == 1 or B // d >= 2:
            best = d
    return best


# --------------------------------- the kernel ----------------------------------

def _make_ppm_kernel(bins, C, R, Bt):
    def kernel(*refs):
        x_ref = refs[0]
        o_ref = refs[-1]
        bin_refs = refs[1:-1]

        x = x_ref[...]                                   # (Bt, C, HW)
        HW = x.shape[-1]

        # Identity branch of the concat: first C output channels are x itself.
        o_ref[:, 0:C, :] = x.astype(o_ref.dtype)

        xf = x if x.dtype == jnp.float32 else x.astype(jnp.float32)
        x2 = xf.reshape(Bt * C, HW)                      # (Bt*C, HW), lanes = HW

        for bi, nb in enumerate(bins):
            p_ref = bin_refs[3 * bi + 0]                 # (HW, nb*nb) pooling operator
            w_ref = bin_refs[3 * bi + 1]                 # (R, C)      1x1 conv weight
            q_ref = bin_refs[3 * bi + 2]                 # (nb*nb, HW) bilinear upsample operator

            if nb == 1:
                # Global average pool: plain lane reduce, no degenerate N=1 MXU matmul.
                pooled = jnp.mean(x2, axis=-1, keepdims=True)            # (Bt*C, 1)
            else:
                pooled = jnp.dot(x2, p_ref[...],
                                 preferred_element_type=jnp.float32)     # (Bt*C, nb*nb)

            w1 = w_ref[...]
            q = q_ref[...]
            for t in range(Bt):                          # Bt is small & static -> unrolled
                pc = pooled[t * C:(t + 1) * C, :]                        # (C, nb*nb)
                feat = jnp.maximum(
                    jnp.dot(w1, pc, preferred_element_type=jnp.float32), 0.0)   # (R, nb*nb)
                up = jnp.dot(feat, q, preferred_element_type=jnp.float32)       # (R, HW)
                o_ref[t:t + 1, C + bi * R:C + (bi + 1) * R, :] = \
                    up[None].astype(o_ref.dtype)

    return kernel


# --------------------------------- the wrapper ----------------------------------

def ppm_pallas(x_nchw, weights, bins):
    """x_nchw: (B, C, H, W); weights: list of (R, C) 1x1-conv matrices (no bias), one per bin.
    Returns PPM(x): (B, C + len(bins)*R, H, W)."""
    B, C, H, W = x_nchw.shape
    HW = H * W
    R = int(weights[0].shape[0])
    n_bins = len(bins)
    C_out = C + n_bins * R
    dtype = x_nchw.dtype

    # TODO(synk): if H*W is not a multiple of 128 at real shapes, pad HW in the wrapper
    # (zero rows in P / dropped columns of Q) to keep output stores lane-dense.
    x = x_nchw.reshape(B, C, HW)

    # Precompute per-bin pooling / upsampling operators (constants for a given shape).
    params, param_specs = [], []
    param_bytes = 0
    for nb, w in zip(bins, weights):
        nb2 = nb * nb
        A_h = _adaptive_pool_matrix(nb, H)
        A_w = _adaptive_pool_matrix(nb, W)
        P = np.einsum('ih,jw->hwij', A_h, A_w).reshape(HW, nb2).astype(np.float32)
        U_h = _bilinear_matrix(H, nb)
        U_w = _bilinear_matrix(W, nb)
        Q = np.einsum('hi,wj->ijhw', U_h, U_w).reshape(nb2, HW).astype(np.float32)
        params += [jnp.asarray(P), jnp.asarray(w, jnp.float32).reshape(R, C), jnp.asarray(Q)]
        param_specs += [
            pl.BlockSpec((HW, nb2), lambda b: (0, 0)),
            pl.BlockSpec((R, C), lambda b: (0, 0)),
            pl.BlockSpec((nb2, HW), lambda b: (0, 0)),
        ]
        param_bytes += 4 * (HW * nb2 + R * C + nb2 * HW)

    # Group batch elements so each grid step moves a reasonably sized, VMEM-safe chunk.
    itemsize = np.dtype(dtype).itemsize
    bytes_per_batch = (C + C_out) * HW * itemsize
    Bt = _choose_batch_tile(B, bytes_per_batch)
    grid = (B // Bt,)

    flops = 0
    for nb in bins:
        nb2 = nb * nb
        flops += 2 * B * nb2 * (C * HW + R * C + R * HW)
    bytes_accessed = itemsize * (B * C * HW + B * C_out * HW) + param_bytes

    out = pl.pallas_call(
        _make_ppm_kernel(tuple(bins), C, R, Bt),
        out_shape=jax.ShapeDtypeStruct((B, C_out, HW), dtype),
        grid_spec=pltpu.PrefetchScalarGridSpec(
            num_scalar_prefetch=0,
            grid=grid,
            in_specs=[pl.BlockSpec((Bt, C, HW), lambda b: (b, 0, 0))] + param_specs,
            out_specs=pl.BlockSpec((Bt, C_out, HW), lambda b: (b, 0, 0)),
        ),
        compiler_params=pltpu.CompilerParams(dimension_semantics=("parallel",)),
        cost_estimate=pl.CostEstimate(
            flops=int(flops), transcendentals=0, bytes_accessed=int(bytes_accessed)),
    )(x, *params)

    return out.reshape(B, C_out, H, W)


# ---------------------------- numpy reference (spec) ----------------------------

def _reference_numpy(x, weights, bins):
    B, C, H, W = x.shape
    outs = [x.astype(np.float32)]
    for w, nb in zip(weights, bins):
        R = w.shape[0]
        pooled = np.zeros((B, C, nb, nb), np.float32)
        for i in range(nb):
            hs = (i * H) // nb
            he = -((-(i + 1) * H) // nb)
            for j in range(nb):
                ws = (j * W) // nb
                we = -((-(j + 1) * W) // nb)
                pooled[:, :, i, j] = x[:, :, hs:he, ws:we].mean(axis=(2, 3))
        feat = np.maximum(np.einsum('rc,bcij->brij', w, pooled), 0.0)
        up = np.zeros((B, R, H, W), np.float32)
        for h in range(H):
            sh = 0.0 if nb == 1 else h * (nb - 1) / (H - 1)
            h0 = min(int(np.floor(sh)), nb - 1)
            h1 = min(h0 + 1, nb - 1)
            fh = sh - h0
            for ww in range(W):
                sw = 0.0 if nb == 1 else ww * (nb - 1) / (W - 1)
                w0 = min(int(np.floor(sw)), nb - 1)
                w1 = min(w0 + 1, nb - 1)
                fw = sw - w0
                up[:, :, h, ww] = ((1 - fh) * (1 - fw) * feat[:, :, h0, w0]
                                   + (1 - fh) * fw * feat[:, :, h0, w1]
                                   + fh * (1 - fw) * feat[:, :, h1, w0]
                                   + fh * fw * feat[:, :, h1, w1])
        outs.append(up)
    return np.concatenate(outs, axis=1)


if __name__ == "__main__":
    B, C, H, W = 2, 32, 16, 16
    bins = (1, 2, 3, 6)
    R = C // len(bins)          # reduction_dim = 8

    key = jax.random.PRNGKey(0)
    keys = jax.random.split(key, 1 + len(bins))
    x = jax.random.normal(keys[0], (B, C, H, W), dtype=jnp.float32)
    weights = [0.1 * jax.random.normal(k, (R, C), dtype=jnp.float32) for k in keys[1:]]

    out = ppm_pallas(x, weights, bins)
    out = jax.block_until_ready(out)

    ref = _reference_numpy(np.asarray(x), [np.asarray(w) for w in weights], bins)
    assert out.shape == (B, C + len(bins) * R, H, W), out.shape
    err = float(np.max(np.abs(np.asarray(out) - ref)))
    assert np.allclose(np.asarray(out), ref, atol=1e-3, rtol=1e-3), f"max abs err {err}"
    print("KERNEL_OK")
</pallas_src>

<mosaic_0001>
module attributes {stable_mosaic.version = 11 : i64} {
  func.func @kernel(%arg0: i32, %arg1: memref<1x32x256xf32, #tpu.memory_space<vmem>>, %arg2: memref<256x1xf32, #tpu.memory_space<vmem>>, %arg3: memref<8x32xf32, #tpu.memory_space<vmem>>, %arg4: memref<1x256xf32, #tpu.memory_space<vmem>>, %arg5: memref<256x4xf32, #tpu.memory_space<vmem>>, %arg6: memref<8x32xf32, #tpu.memory_space<vmem>>, %arg7: memref<4x256xf32, #tpu.memory_space<vmem>>, %arg8: memref<256x9xf32, #tpu.memory_space<vmem>>, %arg9: memref<8x32xf32, #tpu.memory_space<vmem>>, %arg10: memref<9x256xf32, #tpu.memory_space<vmem>>, %arg11: memref<256x36xf32, #tpu.memory_space<vmem>>, %arg12: memref<8x32xf32, #tpu.memory_space<vmem>>, %arg13: memref<36x256xf32, #tpu.memory_space<vmem>>, %arg14: memref<1x64x256xf32, #tpu.memory_space<vmem>>) attributes {dimension_semantics = [#tpu.dimension_semantics<parallel>], iteration_bounds = array<i64: 2>, scalar_prefetch = 0 : i64, scratch_operands = 0 : i64, tpu.core_type = #tpu.core_type<tc>, window_params = [{transform_indices = @transform_0, window_bounds = array<i64: 1, 32, 256>}, {pipeline_mode = #tpu.pipeline_mode<synchronous>, transform_indices = @transform_1, window_bounds = array<i64: 256, 1>}, {pipeline_mode = #tpu.pipeline_mode<synchronous>, transform_indices = @transform_2, window_bounds = array<i64: 8, 32>}, {pipeline_mode = #tpu.pipeline_mode<synchronous>, transform_indices = @transform_3, window_bounds = array<i64: 1, 256>}, {pipeline_mode = #tpu.pipeline_mode<synchronous>, transform_indices = @transform_4, window_bounds = array<i64: 256, 4>}, {pipeline_mode = #tpu.pipeline_mode<synchronous>, transform_indices = @transform_5, window_bounds = array<i64: 8, 32>}, {pipeline_mode = #tpu.pipeline_mode<synchronous>, transform_indices = @transform_6, window_bounds = array<i64: 4, 256>}, {pipeline_mode = #tpu.pipeline_mode<synchronous>, transform_indices = @transform_7, window_bounds = array<i64: 256, 9>}, {pipeline_mode = #tpu.pipeline_mode<synchronous>, transform_indices = @transform_8, window_bounds = array<i64: 8, 32>}, {pipeline_mode = #tpu.pipeline_mode<synchronous>, transform_indices = @transform_9, window_bounds = array<i64: 9, 256>}, {pipeline_mode = #tpu.pipeline_mode<synchronous>, transform_indices = @transform_10, window_bounds = array<i64: 256, 36>}, {pipeline_mode = #tpu.pipeline_mode<synchronous>, transform_indices = @transform_11, window_bounds = array<i64: 8, 32>}, {pipeline_mode = #tpu.pipeline_mode<synchronous>, transform_indices = @transform_12, window_bounds = array<i64: 36, 256>}, {transform_indices = @transform_13, window_bounds = array<i64: 1, 64, 256>}]} {
    %c0 = arith.constant 0 : index
    %c0_0 = arith.constant 0 : index
    %c0_1 = arith.constant 0 : index
    %0 = vector.load %arg1[%c0, %c0_0, %c0_1] : memref<1x32x256xf32, #tpu.memory_space<vmem>>, vector<1x32x256xf32>
    %c0_2 = arith.constant 0 : index
    %c0_3 = arith.constant 0 : index
    %c0_4 = arith.constant 0 : index
    %1 = vector.load %arg14[%c0_2, %c0_3, %c0_4] : memref<1x64x256xf32, #tpu.memory_space<vmem>>, vector<1x32x256xf32>
    tpu.vector_store %arg14[%c0_2, %c0_3, %c0_4], %0 {strides = array<i32>} : memref<1x64x256xf32, #tpu.memory_space<vmem>>, vector<1x32x256xf32>,
    %2 = vector.shape_cast %0 : vector<1x32x256xf32> to vector<32x256xf32>
    %cst = arith.constant dense<0.000000e+00> : vector<32xf32>
    %3 = vector.multi_reduction <add>, %2, %cst [1] : vector<32x256xf32> to vector<32xf32>
    %4 = vector.shape_cast %3 : vector<32xf32> to vector<32x1xf32>
    %cst_5 = arith.constant 2.560000e+02 : f32
    %5 = vector.broadcast %cst_5 : f32 to vector<32x1xf32>
    %6 = arith.divf %4, %5 : vector<32x1xf32>
    %c0_6 = arith.constant 0 : index
    %c0_7 = arith.constant 0 : index
    %7 = vector.load %arg3[%c0_6, %c0_7] : memref<8x32xf32, #tpu.memory_space<vmem>>, vector<8x32xf32>
    %c0_8 = arith.constant 0 : index
    %c0_9 = arith.constant 0 : index
    %8 = vector.load %arg4[%c0_8, %c0_9] : memref<1x256xf32, #tpu.memory_space<vmem>>, vector<1x256xf32>
    %cst_10 = arith.constant dense<0.000000e+00> : vector<8x1xf32>
    %9 = tpu.matmul %7, %6, %cst_10 {dimension_numbers = #tpu.dot_dimension_numbers<[1], [0], [0], [1], [0, 0, 1, 1], [], []>} : vector<8x32xf32>, vector<32x1xf32>, vector<8x1xf32> -> vector<8x1xf32>
    %cst_11 = arith.constant 0.000000e+00 : f32
    %10 = vector.broadcast %cst_11 : f32 to vector<8x1xf32>
    %11 = arith.maximumf %9, %10 : vector<8x1xf32>
    %cst_12 = arith.constant dense<0.000000e+00> : vector<8x256xf32>
    %12 = tpu.matmul %11, %8, %cst_12 {dimension_numbers = #tpu.dot_dimension_numbers<[1], [0], [0], [1], [0, 0, 1, 1], [], []>} : vector<8x1xf32>, vector<1x256xf32>, vector<8x256xf32> -> vector<8x256xf32>
    %13 = vector.shape_cast %12 : vector<8x256xf32> to vector<1x8x256xf32>
    %c0_13 = arith.constant 0 : index
    %c32 = arith.constant 32 : index
    %c0_14 = arith.constant 0 : index
    %14 = vector.load %arg14[%c0_13, %c32, %c0_14] : memref<1x64x256xf32, #tpu.memory_space<vmem>>, vector<1x8x256xf32>
    tpu.vector_store %arg14[%c0_13, %c32, %c0_14], %13 {strides = array<i32>} : memref<1x64x256xf32, #tpu.memory_space<vmem>>, vector<1x8x256xf32>,
    %c0_15 = arith.constant 0 : index
    %c0_16 = arith.constant 0 : index
    %15 = vector.load %arg5[%c0_15, %c0_16] : memref<256x4xf32, #tpu.memory_space<vmem>>, vector<256x4xf32>
    %cst_17 = arith.constant dense<0.000000e+00> : vector<32x4xf32>
    %16 = tpu.matmul %2, %15, %cst_17 {dimension_numbers = #tpu.dot_dimension_numbers<[1], [0], [0], [1], [0, 0, 1, 1], [], []>} : vector<32x256xf32>, vector<256x4xf32>, vector<32x4xf32> -> vector<32x4xf32>
    %c0_18 = arith.constant 0 : index
    %c0_19 = arith.constant 0 : index
    %17 = vector.load %arg6[%c0_18, %c0_19] : memref<8x32xf32, #tpu.memory_space<vmem>>, vector<8x32xf32>
    %c0_20 = arith.constant 0 : index
    %c0_21 = arith.constant 0 : index
    %18 = vector.load %arg7[%c0_20, %c0_21] : memref<4x256xf32, #tpu.memory_space<vmem>>, vector<4x256xf32>
    %cst_22 = arith.constant dense<0.000000e+00> : vector<8x4xf32>
    %19 = tpu.matmul %17, %16, %cst_22 {dimension_numbers = #tpu.dot_dimension_numbers<[1], [0], [0], [1], [0, 0, 1, 1], [], []>} : vector<8x32xf32>, vector<32x4xf32>, vector<8x4xf32> -> vector<8x4xf32>
    %cst_23 = arith.constant 0.000000e+00 : f32
    %20 = vector.broadcast %cst_23 : f32 to vector<8x4xf32>
    %21 = arith.maximumf %19, %20 : vector<8x4xf32>
    %cst_24 = arith.constant dense<0.000000e+00> : vector<8x256xf32>
    %22 = tpu.matmul %21, %18, %cst_24 {dimension_numbers = #tpu.dot_dimension_numbers<[1], [0], [0], [1], [0, 0, 1, 1], [], []>} : vector<8x4xf32>, vector<4x256xf32>, vector<8x256xf32> -> vector<8x256xf32>
    %23 = vector.shape_cast %22 : vector<8x256xf32> to vector<1x8x256xf32>
    %c0_25 = arith.constant 0 : index
    %c40 = arith.constant 40 : index
    %c0_26 = arith.constant 0 : index
    %24 = vector.load %arg14[%c0_25, %c40, %c0_26] : memref<1x64x256xf32, #tpu.memory_space<vmem>>, vector<1x8x256xf32>
    tpu.vector_store %arg14[%c0_25, %c40, %c0_26], %23 {strides = array<i32>} : memref<1x64x256xf32, #tpu.memory_space<vmem>>, vector<1x8x256xf32>,
    %c0_27 = arith.constant 0 : index
    %c0_28 = arith.constant 0 : index
    %25 = vector.load %arg8[%c0_27, %c0_28] : memref<256x9xf32, #tpu.memory_space<vmem>>, vector<256x9xf32>
    %cst_29 = arith.constant dense<0.000000e+00> : vector<32x9xf32>
    %26 = tpu.matmul %2, %25, %cst_29 {dimension_numbers = #tpu.dot_dimension_numbers<[1], [0], [0], [1], [0, 0, 1, 1], [], []>} : vector<32x256xf32>, vector<256x9xf32>, vector<32x9xf32> -> vector<32x9xf32>
    %c0_30 = arith.constant 0 : index
    %c0_31 = arith.constant 0 : index
    %27 = vector.load %arg9[%c0_30, %c0_31] : memref<8x32xf32, #tpu.memory_space<vmem>>, vector<8x32xf32>
    %c0_32 = arith.constant 0 : index
    %c0_33 = arith.constant 0 : index
    %28 = vector.load %arg10[%c0_32, %c0_33] : memref<9x256xf32, #tpu.memory_space<vmem>>, vector<9x256xf32>
    %cst_34 = arith.constant dense<0.000000e+00> : vector<8x9xf32>
    %29 = tpu.matmul %27, %26, %cst_34 {dimension_numbers = #tpu.dot_dimension_numbers<[1], [0], [0], [1], [0, 0, 1, 1], [], []>} : vector<8x32xf32>, vector<32x9xf32>, vector<8x9xf32> -> vector<8x9xf32>
    %cst_35 = arith.constant 0.000000e+00 : f32
    %30 = vector.broadcast %cst_35 : f32 to vector<8x9xf32>
    %31 = arith.maximumf %29, %30 : vector<8x9xf32>
    %cst_36 = arith.constant dense<0.000000e+00> : vector<8x256xf32>
    %32 = tpu.matmul %31, %28, %cst_36 {dimension_numbers = #tpu.dot_dimension_numbers<[1], [0], [0], [1], [0, 0, 1, 1], [], []>} : vector<8x9xf32>, vector<9x256xf32>, vector<8x256xf32> -> vector<8x256xf32>
    %33 = vector.shape_cast %32 : vector<8x256xf32> to vector<1x8x256xf32>
    %c0_37 = arith.constant 0 : index
    %c48 = arith.constant 48 : index
    %c0_38 = arith.constant 0 : index
    %34 = vector.load %arg14[%c0_37, %c48, %c0_38] : memref<1x64x256xf32, #tpu.memory_space<vmem>>, vector<1x8x256xf32>
    tpu.vector_store %arg14[%c0_37, %c48, %c0_38], %33 {strides = array<i32>} : memref<1x64x256xf32, #tpu.memory_space<vmem>>, vector<1x8x256xf32>,
    %c0_39 = arith.constant 0 : index
    %c0_40 = arith.constant 0 : index
    %35 = vector.load %arg11[%c0_39, %c0_40] : memref<256x36xf32, #tpu.memory_space<vmem>>, vector<256x36xf32>
    %cst_41 = arith.constant dense<0.000000e+00> : vector<32x36xf32>
    %36 = tpu.matmul %2, %35, %cst_41 {dimension_numbers = #tpu.dot_dimension_numbers<[1], [0], [0], [1], [0, 0, 1, 1], [], []>} : vector<32x256xf32>, vector<256x36xf32>, vector<32x36xf32> -> vector<32x36xf32>
    %c0_42 = arith.constant 0 : index
    %c0_43 = arith.constant 0 : index
    %37 = vector.load %arg12[%c0_42, %c0_43] : memref<8x32xf32, #tpu.memory_space<vmem>>, vector<8x32xf32>
    %c0_44 = arith.constant 0 : index
    %c0_45 = arith.constant 0 : index
    %38 = vector.load %arg13[%c0_44, %c0_45] : memref<36x256xf32, #tpu.memory_space<vmem>>, vector<36x256xf32>
    %cst_46 = arith.constant dense<0.000000e+00> : vector<8x36xf32>
    %39 = tpu.matmul %37, %36, %cst_46 {dimension_numbers = #tpu.dot_dimension_numbers<[1], [0], [0], [1], [0, 0, 1, 1], [], []>} : vector<8x32xf32>, vector<32x36xf32>, vector<8x36xf32> -> vector<8x36xf32>
    %cst_47 = arith.constant 0.000000e+00 : f32
    %40 = vector.broadcast %cst_47 : f32 to vector<8x36xf32>
    %41 = arith.maximumf %39, %40 : vector<8x36xf32>
    %cst_48 = arith.constant dense<0.000000e+00> : vector<8x256xf32>
    %42 = tpu.matmul %41, %38, %cst_48 {dimension_numbers = #tpu.dot_dimension_numbers<[1], [0], [0], [1], [0, 0, 1, 1], [], []>} : vector<8x36xf32>, vector<36x256xf32>, vector<8x256xf32> -> vector<8x256xf32>
    %43 = vector.shape_cast %42 : vector<8x256xf32> to vector<1x8x256xf32>
    %c0_49 = arith.constant 0 : index
    %c56 = arith.constant 56 : index
    %c0_50 = arith.constant 0 : index
    %44 = vector.load %arg14[%c0_49, %c56, %c0_50] : memref<1x64x256xf32, #tpu.memory_space<vmem>>, vector<1x8x256xf32>
    tpu.vector_store %arg14[%c0_49, %c56, %c0_50], %43 {strides = array<i32>} : memref<1x64x256xf32, #tpu.memory_space<vmem>>, vector<1x8x256xf32>,
    return
  }
  func.func @transform_0(%arg0: i32) -> (i32, i32, i32) {
    %c0_i32 = arith.constant 0 : i32
    %c0_i32_0 = arith.constant 0 : i32
    %c0_i32_1 = arith.constant 0 : i32
    return %arg0, %c0_i32, %c0_i32_0 : i32, i32, i32
  }
  func.func @transform_1(%arg0: i32) -> (i32, i32) {
    %c0_i32 = arith.constant 0 : i32
    %c0_i32_0 = arith.constant 0 : i32
    %c0_i32_1 = arith.constant 0 : i32
    return %c0_i32, %c0_i32_0 : i32, i32
  }
  func.func @transform_2(%arg0: i32) -> (i32, i32) {
    %c0_i32 = arith.constant 0 : i32
    %c0_i32_0 = arith.constant 0 : i32
    %c0_i32_1 = arith.constant 0 : i32
    return %c0_i32, %c0_i32_0 : i32, i32
  }
  func.func @transform_3(%arg0: i32) -> (i32, i32) {
    %c0_i32 = arith.constant 0 : i32
    %c0_i32_0 = arith.constant 0 : i32
    %c0_i32_1 = arith.constant 0 : i32
    return %c0_i32, %c0_i32_0 : i32, i32
  }
  func.func @transform_4(%arg0: i32) -> (i32, i32) {
    %c0_i32 = arith.constant 0 : i32
    %c0_i32_0 = arith.constant 0 : i32
    %c0_i32_1 = arith.constant 0 : i32
    return %c0_i32, %c0_i32_0 : i32, i32
  }
  func.func @transform_5(%arg0: i32) -> (i32, i32) {
    %c0_i32 = arith.constant 0 : i32
    %c0_i32_0 = arith.constant 0 : i32
    %c0_i32_1 = arith.constant 0 : i32
    return %c0_i32, %c0_i32_0 : i32, i32
  }
  func.func @transform_6(%arg0: i32) -> (i32, i32) {
    %c0_i32 = arith.constant 0 : i32
    %c0_i32_0 = arith.constant 0 : i32
    %c0_i32_1 = arith.constant 0 : i32
    return %c0_i32, %c0_i32_0 : i32, i32
  }
  func.func @transform_7(%arg0: i32) -> (i32, i32) {
    %c0_i32 = arith.constant 0 : i32
    %c0_i32_0 = arith.constant 0 : i32
    %c0_i32_1 = arith.constant 0 : i32
    return %c0_i32, %c0_i32_0 : i32, i32
  }
  func.func @transform_8(%arg0: i32) -> (i32, i32) {
    %c0_i32 = arith.constant 0 : i32
    %c0_i32_0 = arith.constant 0 : i32
    %c0_i32_1 = arith.constant 0 : i32
    return %c0_i32, %c0_i32_0 : i32, i32
  }
  func.func @transform_9(%arg0: i32) -> (i32, i32) {
    %c0_i32 = arith.constant 0 : i32
    %c0_i32_0 = arith.constant 0 : i32
    %c0_i32_1 = arith.constant 0 : i32
    return %c0_i32, %c0_i32_0 : i32, i32
  }
  func.func @transform_10(%arg0: i32) -> (i32, i32) {
    %c0_i32 = arith.constant 0 : i32
    %c0_i32_0 = arith.constant 0 : i32
    %c0_i32_1 = arith.constant 0 : i32
    return %c0_i32, %c0_i32_0 : i32, i32
  }
  func.func @transform_11(%arg0: i32) -> (i32, i32) {
    %c0_i32 = arith.constant 0 : i32
    %c0_i32_0 = arith.constant 0 : i32
    %c0_i32_1 = arith.constant 0 : i32
    return %c0_i32, %c0_i32_0 : i32, i32
  }
  func.func @transform_12(%arg0: i32) -> (i32, i32) {
    %c0_i32 = arith.constant 0 : i32
    %c0_i32_0 = arith.constant 0 : i32
    %c0_i32_1 = arith.constant 0 : i32
    return %c0_i32, %c0_i32_0 : i32, i32
  }
  func.func @transform_13(%arg0: i32) -> (i32, i32, i32) {
    %c0_i32 = arith.constant 0 : i32
    %c0_i32_0 = arith.constant 0 : i32
    %c0_i32_1 = arith.constant 0 : i32
    return %arg0, %c0_i32, %c0_i32_0 : i32, i32, i32
  }
}

</mosaic_0001>

<llo_original>
// kernel: tpu_custom_call.1
$region0: #{tpu_custom_call.1}
  #allocation0 [shape = 'u32[]', space=smem, size = 0x4, offset = 0x4, fixed_abs, tag = 'smem constant byte address 0x4 - core index']
  #allocation1 [shape = 'u32[72,128]{1,0:T(1,128)}', space=vmem, size = 0x9000, scoped, tag = 'internal scratch']
  %s0 = inlined_call_operand.vmem [shape: f32[2,32,256], index: 0, kind: input, shape index: {}]
  %s1 = inlined_call_operand.vmem [shape: f32[256,1], index: 1, kind: input, shape index: {}]
  %s2 = inlined_call_operand.vmem [shape: f32[8,32], index: 2, kind: input, shape index: {}]
  %s3 = inlined_call_operand.vmem [shape: f32[1,256], index: 3, kind: input, shape index: {}]
  %s4 = inlined_call_operand.vmem [shape: f32[256,4], index: 4, kind: input, shape index: {}]
  %s5 = inlined_call_operand.vmem [shape: f32[8,32], index: 5, kind: input, shape index: {}]
  %s6 = inlined_call_operand.vmem [shape: f32[4,256], index: 6, kind: input, shape index: {}]
  %s7 = inlined_call_operand.vmem [shape: f32[256,9], index: 7, kind: input, shape index: {}]
  %s8 = inlined_call_operand.vmem [shape: f32[8,32], index: 8, kind: input, shape index: {}]
  %s9 = inlined_call_operand.vmem [shape: f32[9,256], index: 9, kind: input, shape index: {}]
  %s10 = inlined_call_operand.vmem [shape: f32[256,36], index: 10, kind: input, shape index: {}]
  %s11 = inlined_call_operand.vmem [shape: f32[8,32], index: 11, kind: input, shape index: {}]
  %s12 = inlined_call_operand.vmem [shape: f32[36,256], index: 12, kind: input, shape index: {}]
  %s13 = inlined_call_operand.hbm [shape: f32[2,64,256], index: 13, kind: output, shape index: {}]
  %s14 = sld [smem:[#allocation0]]
  $region85: #{tpu_custom_call.1} parent=0
    _
  %s16 = ssub.s32 1, %s14
  %s17 = scalar_select 0, %s16, %s14
  $region1: #{tpu_custom_call.1} parent=0
    #allocation2 [shape = 'u8[131072]{0}', space=vmem, size = 0x20000, scoped, tag = 'output window, operand 0']
    #allocation3 [shape = 's32[2]{0}', space=sflag, size = 0x8, scoped, tag = 'scoped memory for tpu_custom_call.1']
    %18 = vsyncpa [#allocation3], 0
    %s19 = scalar_lea.sflag [#allocation3], 1
    %20 = vsyncpa %s19, 0
    loop: start=0, step=1, limit=4
    $region2: #{tpu_custom_call.1} parent=1 // loop_pre_header
      _
    $region3: #{tpu_custom_call.1} parent=1 // loop_header
      %s22 = sphi 0, %s26
      %p23 = scmp.ge.s32.totalorder %s22, 4
      %s32 = sphi 0, %s34
      %s35 = sphi 0, %s32
      %s36 = sphi 0, %s35
      %s52 = sphi 0, %s36
      %s56 = sphi 0, %s56
      %s58 = sphi 0, %s56
      %s59 = sphi 0, %s58
      %s73 = sphi 0, %s59
      %s77 = sphi 0, %s77
      %s79 = sphi 0, %s77
      %s80 = sphi 0, %s79
      %s94 = sphi 0, %s80
      %s98 = sphi 0, %s98
      %s100 = sphi 0, %s98
      %s101 = sphi 0, %s100
      %s115 = sphi 0, %s101
      %s119 = sphi 0, %s119
      %s121 = sphi 0, %s119
      %s122 = sphi 0, %s121
      %s136 = sphi 0, %s122
      %s140 = sphi 0, %s140
      %s142 = sphi 0, %s140
      %s143 = sphi 0, %s142
      %s157 = sphi 0, %s143
      %s161 = sphi 0, %s161
      %s163 = sphi 0, %s161
      %s164 = sphi 0, %s163
      %s178 = sphi 0, %s164
      %s182 = sphi 0, %s182
      %s184 = sphi 0, %s182
      %s185 = sphi 0, %s184
      %s199 = sphi 0, %s185
      %s203 = sphi 0, %s203
      %s205 = sphi 0, %s203
      %s206 = sphi 0, %s205
      %s220 = sphi 0, %s206
      %s224 = sphi 0, %s224
      %s226 = sphi 0, %s224
      %s227 = sphi 0, %s226
      %s241 = sphi 0, %s227
      %s245 = sphi 0, %s245
      %s247 = sphi 0, %s245
      %s248 = sphi 0, %s247
      %s262 = sphi 0, %s248
      %s266 = sphi 0, %s266
      %s268 = sphi 0, %s266
      %s269 = sphi 0, %s268
      %s283 = sphi 0, %s269
      %s287 = sphi 0, %s287
      %s289 = sphi 0, %s287
      %s290 = sphi 0, %s289
      %s304 = sphi 0, %s290
      %s310 = sphi 0, %s312
      %s313 = sphi 0, %s310
      %s314 = sphi 0, %s313
      %s330 = sphi 0, %s314
    $region4: #{tpu_custom_call.1} parent=1 // loop_header_branch
      %25 = sbr.rel (%p23) target = $region8
    $region5: #{tpu_custom_call.1} parent=1 // loop_body
      %s27 = ssub.s32 %s22, 1
      %s28 = ssub.s32 %s22, 2
      %s29 = sadd.s32 %s22, 1
      %s30 = ssub.s32 %s22, %s29
      %p31 = scmp.eq.s32.totalorder %s30, 0
      %s33 = sadd.s32 %s32, 1
      %s34 = scalar_select %p31, %s32, %s33
      %p37 = pneg %p31
      %p38 = scmp.eq.s32.totalorder %s22, 1
      %p39 = por %p37, %p38
      %p40 = scmp.ne.s32.totalorder %s32, %s35
      %p41 = scmp.eq.s32.totalorder %s22, 0
      %p42 = por %p40, %p41
      %p43 = scmp.ne.s32.totalorder %s32, %s35
      %p44 = scmp.eq.s32.totalorder %s27, 1
      %p45 = por %p43, %p44
      %p46 = scmp.ne.s32.totalorder %s35, %s36
      %p47 = scmp.eq.s32.totalorder %s27, 0
      %p48 = por %p46, %p47
      %p49 = scmp.ne.s32.totalorder %s35, %s36
      %p50 = scmp.eq.s32.totalorder %s28, 1
      %p51 = por %p49, %p50
      %p53 = scmp.ne.s32.totalorder %s36, %s52
      %p54 = scmp.eq.s32.totalorder %s28, 0
      %p55 = por %p53, %p54
      %s57 = sadd.s32 %s56, 1
      %p60 = scmp.eq.s32.totalorder %s22, 1
      %p61 = scmp.ne.s32.totalorder %s56, %s58
      %p62 = scmp.eq.s32.totalorder %s22, 0
      %p63 = por %p61, %p62
      %p64 = scmp.ne.s32.totalorder %s56, %s58
      %p65 = scmp.eq.s32.totalorder %s27, 1
      %p66 = por %p64, %p65
      %p67 = scmp.ne.s32.totalorder %s58, %s59
      %p68 = scmp.eq.s32.totalorder %s27, 0
      %p69 = por %p67, %p68
      %p70 = scmp.ne.s32.totalorder %s58, %s59
      %p71 = scmp.eq.s32.totalorder %s28, 1
      %p72 = por %p70, %p71
      %p74 = scmp.ne.s32.totalorder %s59, %s73
      %p75 = scmp.eq.s32.totalorder %s28, 0
      %p76 = por %p74, %p75
      %s78 = sadd.s32 %s77, 1
      %p81 = scmp.eq.s32.totalorder %s22, 1
      %p82 = scmp.ne.s32.totalorder %s77, %s79
      %p83 = scmp.eq.s32.totalorder %s22, 0
      %p84 = por %p82, %p83
      %p85 = scmp.ne.s32.totalorder %s77, %s79
      %p86 = scmp.eq.s32.totalorder %s27, 1
      %p87 = por %p85, %p86
      %p88 = scmp.ne.s32.totalorder %s79, %s80
      %p89 = scmp.eq.s32.totalorder %s27, 0
      %p90 = por %p88, %p89
      %p91 = scmp.ne.s32.totalorder %s79, %s80
      %p92 = scmp.eq.s32.totalorder %s28, 1
      %p93 = por %p91, %p92
      %p95 = scmp.ne.s32.totalorder %s80, %s94
      %p96 = scmp.eq.s32.totalorder %s28, 0
      %p97 = por %p95, %p96
      %s99 = sadd.s32 %s98, 1
      %p102 = scmp.eq.s32.totalorder %s22, 1
      %p103 = scmp.ne.s32.totalorder %s98, %s100
      %p104 = scmp.eq.s32.totalorder %s22, 0
      %p105 = por %p103, %p104
      %p106 = scmp.ne.s32.totalorder %s98, %s100
      %p107 = scmp.eq.s32.totalorder %s27, 1
      %p108 = por %p106, %p107
      %p109 = scmp.ne.s32.totalorder %s100, %s101
      %p110 = scmp.eq.s32.totalorder %s27, 0
      %p111 = por %p109, %p110
      %p112 = scmp.ne.s32.totalorder %s100, %s101
      %p113 = scmp.eq.s32.totalorder %s28, 1
      %p114 = por %p112, %p113
      %p116 = scmp.ne.s32.totalorder %s101, %s115
      %p117 = scmp.eq.s32.totalorder %s28, 0
      %p118 = por %p116, %p117
      %s120 = sadd.s32 %s119, 1
      %p123 = scmp.eq.s32.totalorder %s22, 1
      %p124 = scmp.ne.s32.totalorder %s119, %s121
      %p125 = scmp.eq.s32.totalorder %s22, 0
      %p126 = por %p124, %p125
      %p127 = scmp.ne.s32.totalorder %s119, %s121
      %p128 = scmp.eq.s32.totalorder %s27, 1
      %p129 = por %p127, %p128
      %p130 = scmp.ne.s32.totalorder %s121, %s122
      %p131 = scmp.eq.s32.totalorder %s27, 0
      %p132 = por %p130, %p131
      %p133 = scmp.ne.s32.totalorder %s121, %s122
      %p134 = scmp.eq.s32.totalorder %s28, 1
      %p135 = por %p133, %p134
      %p137 = scmp.ne.s32.totalorder %s122, %s136
      %p138 = scmp.eq.s32.totalorder %s28, 0
      %p139 = por %p137, %p138
      %s141 = sadd.s32 %s140, 1
      %p144 = scmp.eq.s32.totalorder %s22, 1
      %p145 = scmp.ne.s32.totalorder %s140, %s142
      %p146 = scmp.eq.s32.totalorder %s22, 0
      %p147 = por %p145, %p146
      %p148 = scmp.ne.s32.totalorder %s140, %s142
      %p149 = scmp.eq.s32.totalorder %s27, 1
      %p150 = por %p148, %p149
      %p151 = scmp.ne.s32.totalorder %s142, %s143
      %p152 = scmp.eq.s32.totalorder %s27, 0
      %p153 = por %p151, %p152
      %p154 = scmp.ne.s32.totalorder %s142, %s143
      %p155 = scmp.eq.s32.totalorder %s28, 1
      %p156 = por %p154, %p155
      %p158 = scmp.ne.s32.totalorder %s143, %s157
      %p159 = scmp.eq.s32.totalorder %s28, 0
      %p160 = por %p158, %p159
      %s162 = sadd.s32 %s161, 1
      %p165 = scmp.eq.s32.totalorder %s22, 1
      %p166 = scmp.ne.s32.totalorder %s161, %s163
      %p167 = scmp.eq.s32.totalorder %s22, 0
      %p168 = por %p166, %p167
      %p169 = scmp.ne.s32.totalorder %s161, %s163
      %p170 = scmp.eq.s32.totalorder %s27, 1
      %p171 = por %p169, %p170
      %p172 = scmp.ne.s32.totalorder %s163, %s164
      %p173 = scmp.eq.s32.totalorder %s27, 0
      %p174 = por %p172, %p173
      %p175 = scmp.ne.s32.totalorder %s163, %s164
      %p176 = scmp.eq.s32.totalorder %s28, 1
      %p177 = por %p175, %p176
      %p179 = scmp.ne.s32.totalorder %s164, %s178
      %p180 = scmp.eq.s32.totalorder %s28, 0
      %p181 = por %p179, %p180
      %s183 = sadd.s32 %s182, 1
      %p186 = scmp.eq.s32.totalorder %s22, 1
      %p187 = scmp.ne.s32.totalorder %s182, %s184
      %p188 = scmp.eq.s32.totalorder %s22, 0
      %p189 = por %p187, %p188
      %p190 = scmp.ne.s32.totalorder %s182, %s184
      %p191 = scmp.eq.s32.totalorder %s27, 1
      %p192 = por %p190, %p191
      %p193 = scmp.ne.s32.totalorder %s184, %s185
      %p194 = scmp.eq.s32.totalorder %s27, 0
      %p195 = por %p193, %p194
      %p196 = scmp.ne.s32.totalorder %s184, %s185
      %p197 = scmp.eq.s32.totalorder %s28, 1
      %p198 = por %p196, %p197
      %p200 = scmp.ne.s32.totalorder %s185, %s199
      %p201 = scmp.eq.s32.totalorder %s28, 0
      %p202 = por %p200, %p201
      %s204 = sadd.s32 %s203, 1
      %p207 = scmp.eq.s32.totalorder %s22, 1
      %p208 = scmp.ne.s32.totalorder %s203, %s205
      %p209 = scmp.eq.s32.totalorder %s22, 0
      %p210 = por %p208, %p209
      %p211 = scmp.ne.s32.totalorder %s203, %s205
      %p212 = scmp.eq.s32.totalorder %s27, 1
      %p213 = por %p211, %p212
      %p214 = scmp.ne.s32.totalorder %s205, %s206
      %p215 = scmp.eq.s32.totalorder %s27, 0
      %p216 = por %p214, %p215
      %p217 = scmp.ne.s32.totalorder %s205, %s206
      %p218 = scmp.eq.s32.totalorder %s28, 1
      %p219 = por %p217, %p218
      %p221 = scmp.ne.s32.totalorder %s206, %s220
      %p222 = scmp.eq.s32.totalorder %s28, 0
      %p223 = por %p221, %p222
      %s225 = sadd.s32 %s224, 1
      %p228 = scmp.eq.s32.totalorder %s22, 1
      %p229 = scmp.ne.s32.totalorder %s224, %s226
      %p230 = scmp.eq.s32.totalorder %s22, 0
      %p231 = por %p229, %p230
      %p232 = scmp.ne.s32.totalorder %s224, %s226
      %p233 = scmp.eq.s32.totalorder %s27, 1
      %p234 = por %p232, %p233
      %p235 = scmp.ne.s32.totalorder %s226, %s227
      %p236 = scmp.eq.s32.totalorder %s27, 0
      %p237 = por %p235, %p236
      %p238 = scmp.ne.s32.totalorder %s226, %s227
      %p239 = scmp.eq.s32.totalorder %s28, 1
      %p240 = por %p238, %p239
      %p242 = scmp.ne.s32.totalorder %s227, %s241
      %p243 = scmp.eq.s32.totalorder %s28, 0
      %p244 = por %p242, %p243
      %s246 = sadd.s32 %s245, 1
      %p249 = scmp.eq.s32.totalorder %s22, 1
      %p250 = scmp.ne.s32.totalorder %s245, %s247
      %p251 = scmp.eq.s32.totalorder %s22, 0
      %p252 = por %p250, %p251
      %p253 = scmp.ne.s32.totalorder %s245, %s247
      %p254 = scmp.eq.s32.totalorder %s27, 1
      %p255 = por %p253, %p254
      %p256 = scmp.ne.s32.totalorder %s247, %s248
      %p257 = scmp.eq.s32.totalorder %s27, 0
      %p258 = por %p256, %p257
      %p259 = scmp.ne.s32.totalorder %s247, %s248
      %p260 = scmp.eq.s32.totalorder %s28, 1
      %p261 = por %p259, %p260
      %p263 = scmp.ne.s32.totalorder %s248, %s262
      %p264 = scmp.eq.s32.totalorder %s28, 0
      %p265 = por %p263, %p264
      %s267 = sadd.s32 %s266, 1
      %p270 = scmp.eq.s32.totalorder %s22, 1
      %p271 = scmp.ne.s32.totalorder %s266, %s268
      %p272 = scmp.eq.s32.totalorder %s22, 0
      %p273 = por %p271, %p272
      %p274 = scmp.ne.s32.totalorder %s266, %s268
      %p275 = scmp.eq.s32.totalorder %s27, 1
      %p276 = por %p274, %p275
      %p277 = scmp.ne.s32.totalorder %s268, %s269
      %p278 = scmp.eq.s32.totalorder %s27, 0
      %p279 = por %p277, %p278
      %p280 = scmp.ne.s32.totalorder %s268, %s269
      %p281 = scmp.eq.s32.totalorder %s28, 1
      %p282 = por %p280, %p281
      %p284 = scmp.ne.s32.totalorder %s269, %s283
      %p285 = scmp.eq.s32.totalorder %s28, 0
      %p286 = por %p284, %p285
      %s288 = sadd.s32 %s287, 1
      %p291 = scmp.eq.s32.totalorder %s22, 1
      %p292 = scmp.ne.s32.totalorder %s287, %s289
      %p293 = scmp.eq.s32.totalorder %s22, 0
      %p294 = por %p292, %p293
      %p295 = scmp.ne.s32.totalorder %s287, %s289
      %p296 = scmp.eq.s32.totalorder %s27, 1
      %p297 = por %p295, %p296
      %p298 = scmp.ne.s32.totalorder %s289, %s290
      %p299 = scmp.eq.s32.totalorder %s27, 0
      %p300 = por %p298, %p299
      %p301 = scmp.ne.s32.totalorder %s289, %s290
      %p302 = scmp.eq.s32.totalorder %s28, 1
      %p303 = por %p301, %p302
      %p305 = scmp.ne.s32.totalorder %s290, %s304
      %p306 = scmp.eq.s32.totalorder %s28, 0
      %p307 = por %p305, %p306
      %s308 = ssub.s32 %s22, %s29
      %p309 = scmp.eq.s32.totalorder %s308, 0
      %s311 = sadd.s32 %s310, 1
      %s312 = scalar_select %p309, %s310, %s311
      %p315 = pneg %p309
      %p316 = scmp.eq.s32.totalorder %s22, 1
      %p317 = por %p315, %p316
      %p318 = scmp.ne.s32.totalorder %s310, %s313
      %p319 = scmp.eq.s32.totalorder %s22, 0
      %p320 = por %p318, %p319
      %p321 = scmp.ne.s32.totalorder %s310, %s313
      %p322 = scmp.eq.s32.totalorder %s27, 1
      %p323 = por %p321, %p322
      %p324 = scmp.ne.s32.totalorder %s313, %s314
      %p325 = scmp.eq.s32.totalorder %s27, 0
      %p326 = por %p324, %p325
      %p327 = scmp.ne.s32.totalorder %s313, %s314
      %p328 = scmp.eq.s32.totalorder %s28, 1
      %p329 = por %p327, %p328
      %p331 = scmp.ne.s32.totalorder %s314, %s330
      %p332 = scmp.eq.s32.totalorder %s28, 0
      %p333 = por %p331, %p332
      %p334 = scmp.le.s32.totalorder 1, %s22
      %p335 = scmp.lt.s32.totalorder %s22, 3
      %p336 = pnand %p334, %p335
      %p337 = pneg %p336
      // Predicated region
      $region9: #{tpu_custom_call.1} parent=5 // pred_check
        _
      $region10: #{tpu_custom_call.1} parent=5 // pred_check_branch
        %339 = sbr.rel (%p336) target = $region12
      $region11: #{tpu_custom_call.1} parent=5 // pred_region
        %s340 = ssub.s32 %s22, 1
        // Predicated region
        $region13: #{tpu_custom_call.1} parent=11 // pred_check
          %p341 = pneg %p69
        $region14: #{tpu_custom_call.1} parent=11 // pred_check_branch
          %343 = sbr.rel (%p341) target = $region16
        $region15: #{tpu_custom_call.1} parent=11 // pred_region
          _
        $region16: #{tpu_custom_call.1} parent=11 // pred_fallthru
          _
        // Predicated region
        $region17: #{tpu_custom_call.1} parent=11 // pred_check
          %p344 = pneg %p90
        $region18: #{tpu_custom_call.1} parent=11 // pred_check_branch
          %346 = sbr.rel (%p344) target = $region20
        $region19: #{tpu_custom_call.1} parent=11 // pred_region
          _
        $region20: #{tpu_custom_call.1} parent=11 // pred_fallthru
          _
        // Predicated region
        $region21: #{tpu_custom_call.1} parent=11 // pred_check
          %p347 = pneg %p111
        $region22: #{tpu_custom_call.1} parent=11 // pred_check_branch
          %349 = sbr.rel (%p347) target = $region24
        $region23: #{tpu_custom_call.1} parent=11 // pred_region
          _
        $region24: #{tpu_custom_call.1} parent=11 // pred_fallthru
          _
        // Predicated region
        $region25: #{tpu_custom_call.1} parent=11 // pred_check
          %p350 = pneg %p132
        $region26: #{tpu_custom_call.1} parent=11 // pred_check_branch
          %352 = sbr.rel (%p350) target = $region28
        $region27: #{tpu_custom_call.1} parent=11 // pred_region
          _
        $region28: #{tpu_custom_call.1} parent=11 // pred_fallthru
          _
        // Predicated region
        $region29: #{tpu_custom_call.1} parent=11 // pred_check
          %p353 = pneg %p153
        $region30: #{tpu_custom_call.1} parent=11 // pred_check_branch
          %355 = sbr.rel (%p353) target = $region32
        $region31: #{tpu_custom_call.1} parent=11 // pred_region
          _
        $region32: #{tpu_custom_call.1} parent=11 // pred_fallthru
          _
        // Predicated region
        $region33: #{tpu_custom_call.1} parent=11 // pred_check
          %p356 = pneg %p174
        $region34: #{tpu_custom_call.1} parent=11 // pred_check_branch
          %358 = sbr.rel (%p356) target = $region36
        $region35: #{tpu_custom_call.1} parent=11 // pred_region
          _
        $region36: #{tpu_custom_call.1} parent=11 // pred_fallthru
          _
        // Predicated region
        $region37: #{tpu_custom_call.1} parent=11 // pred_check
          %p359 = pneg %p195
        $region38: #{tpu_custom_call.1} parent=11 // pred_check_branch
          %361 = sbr.rel (%p359) target = $region40
        $region39: #{tpu_custom_call.1} parent=11 // pred_region
          _
        $region40: #{tpu_custom_call.1} parent=11 // pred_fallthru
          _
        // Predicated region
        $region41: #{tpu_custom_call.1} parent=11 // pred_check
          %p362 = pneg %p216
        $region42: #{tpu_custom_call.1} parent=11 // pred_check_branch
          %364 = sbr.rel (%p362) target = $region44
        $region43: #{tpu_custom_call.1} parent=11 // pred_region
          _
        $region44: #{tpu_custom_call.1} parent=11 // pred_fallthru
          _
        // Predicated region
        $region45: #{tpu_custom_call.1} parent=11 // pred_check
          %p365 = pneg %p237
        $region46: #{tpu_custom_call.1} parent=11 // pred_check_branch
          %367 = sbr.rel (%p365) target = $region48
        $region47: #{tpu_custom_call.1} parent=11 // pred_region
          _
        $region48: #{tpu_custom_call.1} parent=11 // pred_fallthru
          _
        // Predicated region
        $region49: #{tpu_custom_call.1} parent=11 // pred_check
          %p368 = pneg %p258
        $region50: #{tpu_custom_call.1} parent=11 // pred_check_branch
          %370 = sbr.rel (%p368) target = $region52
        $region51: #{tpu_custom_call.1} parent=11 // pred_region
          _
        $region52: #{tpu_custom_call.1} parent=11 // pred_fallthru
          _
        // Predicated region
        $region53: #{tpu_custom_call.1} parent=11 // pred_check
          %p371 = pneg %p279
        $region54: #{tpu_custom_call.1} parent=11 // pred_check_branch
          %373 = sbr.rel (%p371) target = $region56
        $region55: #{tpu_custom_call.1} parent=11 // pred_region
          _
        $region56: #{tpu_custom_call.1} parent=11 // pred_fallthru
          _
        // Predicated region
        $region57: #{tpu_custom_call.1} parent=11 // pred_check
          %p374 = pneg %p300
        $region58: #{tpu_custom_call.1} parent=11 // pred_check_branch
          %376 = sbr.rel (%p374) target = $region60
        $region59: #{tpu_custom_call.1} parent=11 // pred_region
          _
        $region60: #{tpu_custom_call.1} parent=11 // pred_fallthru
          _
      $region12: #{tpu_custom_call.1} parent=5 // pred_fallthru
        _
      %p377 = scmp.lt.s32.totalorder %s22, 2
      // Predicated region
      $region61: #{tpu_custom_call.1} parent=5 // pred_check
        %p378 = pneg %p377
      $region62: #{tpu_custom_call.1} parent=5 // pred_check_branch
        %380 = sbr.rel (%p378) target = $region64
      $region63: #{tpu_custom_call.1} parent=5 // pred_region
        // Predicated region
        $region65: #{tpu_custom_call.1} parent=63 // pred_check
          %p381 = pneg %p42
        $region66: #{tpu_custom_call.1} parent=63 // pred_check_branch
          %383 = sbr.rel (%p381) target = $region68
        $region67: #{tpu_custom_call.1} parent=63 // pred_region
          %p384 = scmp.lt.s32.totalorder %s22, 1
          %s385 = scalar_select %p384, %s22, 1
          %s386 = smul.addr %s385, 8
          %s387 = smul.addr %s386, 8
          %s388 = scalar_lea.vmem %s0, %s387
        $region68: #{tpu_custom_call.1} parent=63 // pred_fallthru
          _
      $region64: #{tpu_custom_call.1} parent=5 // pred_fallthru
        _
      %p389 = scmp.le.s32.totalorder 1, %s22
      %p390 = scmp.lt.s32.totalorder %s22, 3
      %p391 = pnand %p389, %p390
      %p392 = pneg %p391
      // Predicated region
      $region69: #{tpu_custom_call.1} parent=5 // pred_check
        _
      $region70: #{tpu_custom_call.1} parent=5 // pred_check_branch
        %394 = sbr.rel (%p391) target = $region72
      $region71: #{tpu_custom_call.1} parent=5 // pred_region
        %s395 = ssub.s32 %s22, 1
        %p396 = scmp.lt.s32.totalorder %s27, 1
        %s397 = scalar_select %p396, %s27, 1
        %s398 = smul.addr %s397, 8
        %s399 = smul.addr %s398, 8
        %s400 = scalar_lea.vmem %s0, %s399
        %p401 = pneg %p48
        %p402 = pneg %p45
        %p403 = pneg %p69
        %p404 = pneg %p66
        %p405 = pneg %p90
        %p406 = pneg %p87
        %p407 = pneg %p111
        %p408 = pneg %p108
        %p409 = pneg %p132
        %p410 = pneg %p129
        %p411 = pneg %p153
        %p412 = pneg %p150
        %p413 = pneg %p174
        %p414 = pneg %p171
        %p415 = pneg %p195
        %p416 = pneg %p192
        %p417 = pneg %p216
        %p418 = pneg %p213
        %p419 = pneg %p237
        %p420 = pneg %p234
        %p421 = pneg %p258
        %p422 = pneg %p255
        %p423 = pneg %p279
        %p424 = pneg %p276
        %p425 = pneg %p300
        %p426 = pneg %p297
        %p427 = pneg %p326
        %p428 = pneg %p323
        %s429 = sand.u32 %s313, 1
        %s430 = scalar_lea.sflag [#allocation3], %s429
        %s431 = sand.u32 %s313, 1
        %s432 = smul.addr %s431, 128
        %s433 = scalar_lea.vmem [#allocation2], %s432
        %p434 = scmp.lt.s32.totalorder %s27, 1
        %s435 = scalar_select %p434, %s27, 1
        %s436 = smul.addr %s435, 8
        %s437 = smul.addr %s436, 8
        %s438 = scalar_lea.vmem %s0, %s437
        %v439 = vld [vmem:[%s438] sm:$0xff]
        %v440 = vld [vmem:[%s438 + $0x8] sm:$0xff]
        %v441 = vld [vmem:[%s438 + $0x10] sm:$0xff]
        %v442 = vld [vmem:[%s438 + $0x18] sm:$0xff]
        %v443 = vld [vmem:[%s438 + $0x20] sm:$0xff]
        %v444 = vld [vmem:[%s438 + $0x28] sm:$0xff]
        %v445 = vld [vmem:[%s438 + $0x30] sm:$0xff]
        %v446 = vld [vmem:[%s438 + $0x38] sm:$0xff]
        %447 = vst [vmem:[%s433] sm:$0xff] %v439
        %448 = vst [vmem:[%s433 + $0x8] sm:$0xff] %v440
        %449 = vst [vmem:[%s433 + $0x10] sm:$0xff] %v441
        %450 = vst [vmem:[%s433 + $0x18] sm:$0xff] %v442
        %451 = vst [vmem:[%s433 + $0x20] sm:$0xff] %v443
        %452 = vst [vmem:[%s433 + $0x28] sm:$0xff] %v444
        %453 = vst [vmem:[%s433 + $0x30] sm:$0xff] %v445
        %454 = vst [vmem:[%s433 + $0x38] sm:$0xff] %v446
        %v455 = vadd.f32 %v439, %v440
        %456 = vadd.xlane.f32.xlu0 %v455
        %v457 = vpop.xlane.xlu0 %456
        %v458 = vadd.f32 %v441, %v442
        %459 = vadd.xlane.f32.xlu0 %v458
        %v460 = vpop.xlane.xlu0 %459
        %v461 = vadd.f32 %v443, %v444
        %462 = vadd.xlane.f32.xlu0 %v461
        %v463 = vpop.xlane.xlu0 %462
        %v464 = vadd.f32 %v445, %v446
        %465 = vadd.xlane.f32.xlu0 %v464
        %v466 = vpop.xlane.xlu0 %465
        %v467 = vrcp.pop 256.0
        %v468 = vmul.f32 256.0, %v467
        %v469 = vsub.f32 1.0, %v468
        %v470 = vmul.f32 %v467, %v469
        %v471 = vadd.f32 %v467, %v470
        %vm472 = vweird.f32 %v467
        %v473 = vsel %vm472, %v467, %v471
        %v474 = vmul.f32 %v457, %v473
        %v475 = vmul.f32 %v460, %v473
        %v476 = vmul.f32 %v463, %v473
        %v477 = vmul.f32 %v466, %v473
        %v478 = vld [vmem:[%s2] sm:$0xff]
        %v479 = vld [vmem:[%s3] sm:$0x3]
        %vm480 = vcmask 261120
        %v482 = vsel %vm480, %v478, 0
        %484 = vmatpush.msra.mxu0 0.0
        %485 = vmatpush.msra.mxu0 0.0
        %486 = vmatpush.msra.mxu0 0.0
        %487 = vmatpush.msra.mxu0 0.0
        %488 = vmatpush.msra.mxu0 0.0
        %489 = vmatpush.msra.mxu0 0.0
        %490 = vmatpush.msra.mxu0 0.0
        %491 = vmatpush.msra.mxu0 0.0
        %492 = vmatpush.msra.mxu0 0.0
        %493 = vmatpush.msra.mxu0 0.0
        %494 = vmatpush.msra.mxu0 0.0
        %495 = vmatpush.msra.mxu0 0.0
        %496 = vmatpush.msra.mxu0 %v477
        %497 = vmatpush.msra.mxu0 %v476
        %498 = vmatpush.msra.mxu0 %v475
        %499 = vmatpush.msra.mxu0 %v474
        %500 = vmatmul.f32.gmra.mxu0 %v482
        %v501 = vpop.f32.mrf.mxu0
        %v502 = vadd.f32 0.0, %v501
        %503 = vdwg.mxu0
        %v504 = vmax.f32 %v502, 0.0
        %v506 = vperm.slane %v479, 0
        %v507 = vperm.slane %v479, 1
        %vm508 = vcmask 7168
        %v510 = vsel %vm508, %v504, 0
        %vm512 = vcmask 1040384
        %v513 = vsel %vm512, %v506, 0
        %v515 = vsel %vm512, %v507, 0
        %517 = vmatpush.msra.mxu0 0.0
        %518 = vmatpush.msra.mxu0 0.0
        %519 = vmatpush.msra.mxu0 0.0
        %520 = vmatpush.msra.mxu0 0.0
        %521 = vmatpush.msra.mxu0 0.0
        %522 = vmatpush.msra.mxu0 0.0
        %523 = vmatpush.msra.mxu0 0.0
        %524 = vmatpush.msra.mxu0 0.0
        %525 = vmatpush.msra.mxu0 0.0
        %526 = vmatpush.msra.mxu0 0.0
        %527 = vmatpush.msra.mxu0 0.0
        %528 = vmatpush.msra.mxu0 0.0
        %529 = vmatpush.msra.mxu0 0.0
        %530 = vmatpush.msra.mxu0 0.0
        %531 = vmatpush.msra.mxu0 0.0
        %532 = vmatpush.msra.mxu0 %v513
        %533 = vmatmul.f32.gmra.mxu0 %v510
        %v534 = vpop.f32.mrf.mxu0
        %v535 = vadd.f32 0.0, %v534
        %536 = vdwg.mxu0
        %537 = vmatpush.msra.mxu0 0.0
        %538 = vmatpush.msra.mxu0 0.0
        %539 = vmatpush.msra.mxu0 0.0
        %540 = vmatpush.msra.mxu0 0.0
        %541 = vmatpush.msra.mxu0 0.0
        %542 = vmatpush.msra.mxu0 0.0
        %543 = vmatpush.msra.mxu0 0.0
        %544 = vmatpush.msra.mxu0 0.0
        %545 = vmatpush.msra.mxu0 0.0
        %546 = vmatpush.msra.mxu0 0.0
        %547 = vmatpush.msra.mxu0 0.0
        %548 = vmatpush.msra.mxu0 0.0
        %549 = vmatpush.msra.mxu0 0.0
        %550 = vmatpush.msra.mxu0 0.0
        %551 = vmatpush.msra.mxu0 0.0
        %552 = vmatpush.msra.mxu0 %v515
        %553 = vmatmul.f32.gmra.mxu0 %v510
        %v554 = vpop.f32.mrf.mxu0
        %v555 = vadd.f32 0.0, %v554
        %556 = vdwg.mxu0
        %557 = vst [vmem:[%s433 + $0x40] sm:$0xff] %v535
        %558 = vst [vmem:[%s433 + $0x48] sm:$0xff] %v555
        %v559 = vld [vmem:[%s4] sm:$0xff]
        %v560 = vld [vmem:[%s4 + $0x8] sm:$0xff]
        %v561 = vld [vmem:[%s4 + $0x10] sm:$0xff]
        %v562 = vld [vmem:[%s4 + $0x18] sm:$0xff]
        %v563 = vld [vmem:[%s4 + $0x20] sm:$0xff]
        %v564 = vld [vmem:[%s4 + $0x28] sm:$0xff]
        %v565 = vld [vmem:[%s4 + $0x30] sm:$0xff]
        %v566 = vld [vmem:[%s4 + $0x38] sm:$0xff]
        %v567 = vld [vmem:[%s4 + $0x40] sm:$0xff]
        %v568 = vld [vmem:[%s4 + $0x48] sm:$0xff]
        %v569 = vld [vmem:[%s4 + $0x50] sm:$0xff]
        %v570 = vld [vmem:[%s4 + $0x58] sm:$0xff]
        %v571 = vld [vmem:[%s4 + $0x60] sm:$0xff]
        %v572 = vld [vmem:[%s4 + $0x68] sm:$0xff]
        %v573 = vld [vmem:[%s4 + $0x70] sm:$0xff]
        %v574 = vld [vmem:[%s4 + $0x78] sm:$0xff]
        %v575 = vld [vmem:[%s4 + $0x80] sm:$0xff]
        %v576 = vld [vmem:[%s4 + $0x88] sm:$0xff]
        %v577 = vld [vmem:[%s4 + $0x90] sm:$0xff]
        %v578 = vld [vmem:[%s4 + $0x98] sm:$0xff]
        %v579 = vld [vmem:[%s4 + $0xa0] sm:$0xff]
        %v580 = vld [vmem:[%s4 + $0xa8] sm:$0xff]
        %v581 = vld [vmem:[%s4 + $0xb0] sm:$0xff]
        %v582 = vld [vmem:[%s4 + $0xb8] sm:$0xff]
        %v583 = vld [vmem:[%s4 + $0xc0] sm:$0xff]
        %v584 = vld [vmem:[%s4 + $0xc8] sm:$0xff]
        %v585 = vld [vmem:[%s4 + $0xd0] sm:$0xff]
        %v586 = vld [vmem:[%s4 + $0xd8] sm:$0xff]
        %v587 = vld [vmem:[%s4 + $0xe0] sm:$0xff]
        %v588 = vld [vmem:[%s4 + $0xe8] sm:$0xff]
        %v589 = vld [vmem:[%s4 + $0xf0] sm:$0xff]
        %v590 = vld [vmem:[%s4 + $0xf8] sm:$0xff]
        %591 = vmatpush.msra.mxu0 %v574
        %592 = vmatpush.msra.mxu0 %v573
        %593 = vmatpush.msra.mxu0 %v572
        %594 = vmatpush.msra.mxu0 %v571
        %595 = vmatpush.msra.mxu0 %v570
        %596 = vmatpush.msra.mxu0 %v569
        %597 = vmatpush.msra.mxu0 %v568
        %598 = vmatpush.msra.mxu0 %v567
        %599 = vmatpush.msra.mxu0 %v566
        %600 = vmatpush.msra.mxu0 %v565
        %601 = vmatpush.msra.mxu0 %v564
        %602 = vmatpush.msra.mxu0 %v563
        %603 = vmatpush.msra.mxu0 %v562
        %604 = vmatpush.msra.mxu0 %v561
        %605 = vmatpush.msra.mxu0 %v560
        %606 = vmatpush.msra.mxu0 %v559
        %607 = vmatmul.f32.gmra.mxu0 %v439
        %v608 = vpop.f32.mrf.mxu0
        %v609 = vadd.f32 0.0, %v608
        %610 = vmatmul.f32.gmra.mxu0 %v441
        %v611 = vpop.f32.mrf.mxu0
        %v612 = vadd.f32 0.0, %v611
        %613 = vmatmul.f32.gmra.mxu0 %v443
        %v614 = vpop.f32.mrf.mxu0
        %v615 = vadd.f32 0.0, %v614
        %616 = vmatmul.f32.gmra.mxu0 %v445
        %v617 = vpop.f32.mrf.mxu0
        %v618 = vadd.f32 0.0, %v617
        %619 = vdwg.mxu0
        %620 = vmatpush.msra.mxu0 %v590
        %621 = vmatpush.msra.mxu0 %v589
        %622 = vmatpush.msra.mxu0 %v588
        %623 = vmatpush.msra.mxu0 %v587
        %624 = vmatpush.msra.mxu0 %v586
        %625 = vmatpush.msra.mxu0 %v585
        %626 = vmatpush.msra.mxu0 %v584
        %627 = vmatpush.msra.mxu0 %v583
        %628 = vmatpush.msra.mxu0 %v582
        %629 = vmatpush.msra.mxu0 %v581
        %630 = vmatpush.msra.mxu0 %v580
        %631 = vmatpush.msra.mxu0 %v579
        %632 = vmatpush.msra.mxu0 %v578
        %633 = vmatpush.msra.mxu0 %v577
        %634 = vmatpush.msra.mxu0 %v576
        %635 = vmatpush.msra.mxu0 %v575
        %636 = vmatmul.f32.gmra.mxu0 %v440
        %v637 = vpop.f32.mrf.mxu0
        %v638 = vadd.f32 %v609, %v637
        %639 = vmatmul.f32.gmra.mxu0 %v442
        %v640 = vpop.f32.mrf.mxu0
        %v641 = vadd.f32 %v612, %v640
        %642 = vmatmul.f32.gmra.mxu0 %v444
        %v643 = vpop.f32.mrf.mxu0
        %v644 = vadd.f32 %v615, %v643
        %645 = vmatmul.f32.gmra.mxu0 %v446
        %v646 = vpop.f32.mrf.mxu0
        %v647 = vadd.f32 %v618, %v646
        %648 = vdwg.mxu0
        %v649 = vld [vmem:[%s5] sm:$0xff]
        %v650 = vld [vmem:[%s6] sm:$0xff]
        %v652 = vsel %vm480, %v649, 0
        %654 = vmatpush.msra.mxu0 0.0
        %655 = vmatpush.msra.mxu0 0.0
        %656 = vmatpush.msra.mxu0 0.0
        %657 = vmatpush.msra.mxu0 0.0
        %658 = vmatpush.msra.mxu0 0.0
        %659 = vmatpush.msra.mxu0 0.0
        %660 = vmatpush.msra.mxu0 0.0
        %661 = vmatpush.msra.mxu0 0.0
        %662 = vmatpush.msra.mxu0 0.0
        %663 = vmatpush.msra.mxu0 0.0
        %664 = vmatpush.msra.mxu0 0.0
        %665 = vmatpush.msra.mxu0 0.0
        %666 = vmatpush.msra.mxu0 %v647
        %667 = vmatpush.msra.mxu0 %v644
        %668 = vmatpush.msra.mxu0 %v641
        %669 = vmatpush.msra.mxu0 %v638
        %670 = vmatmul.f32.gmra.mxu0 %v652
        %v671 = vpop.f32.mrf.mxu0
        %v672 = vadd.f32 0.0, %v671
        %673 = vdwg.mxu0
        %v674 = vmax.f32 %v672, 0.0
        %676 = vst [vmem:[#allocation1] ss:$2 sm:$0xff] %v650
        %v677 = vld.sshfl [vmem:[#allocation1] sm:$0xff pattern:$0x75316420]
        %v678 = vld.sshfl [vmem:[#allocation1 + $0x8] sm:$0xff pattern:$0x75316420]
        %vm679 = vcmask 31744
        %v681 = vsel %vm679, %v674, 0
        %vm683 = vcmask 1043456
        %v684 = vsel %vm683, %v677, 0
        %v686 = vsel %vm683, %v678, 0
        %688 = vmatpush.msra.mxu0 0.0
        %689 = vmatpush.msra.mxu0 0.0
        %690 = vmatpush.msra.mxu0 0.0
        %691 = vmatpush.msra.mxu0 0.0
        %692 = vmatpush.msra.mxu0 0.0
        %693 = vmatpush.msra.mxu0 0.0
        %694 = vmatpush.msra.mxu0 0.0
        %695 = vmatpush.msra.mxu0 0.0
        %696 = vmatpush.msra.mxu0 0.0
        %697 = vmatpush.msra.mxu0 0.0
        %698 = vmatpush.msra.mxu0 0.0
        %699 = vmatpush.msra.mxu0 0.0
        %700 = vmatpush.msra.mxu0 0.0
        %701 = vmatpush.msra.mxu0 0.0
        %702 = vmatpush.msra.mxu0 0.0
        %703 = vmatpush.msra.mxu0 %v684
        %704 = vmatmul.f32.gmra.mxu0 %v681
        %v705 = vpop.f32.mrf.mxu0
        %v706 = vadd.f32 0.0, %v705
        %707 = vdwg.mxu0
        %708 = vmatpush.msra.mxu0 0.0
        %709 = vmatpush.msra.mxu0 0.0
        %710 = vmatpush.msra.mxu0 0.0
        %711 = vmatpush.msra.mxu0 0.0
        %712 = vmatpush.msra.mxu0 0.0
        %713 = vmatpush.msra.mxu0 0.0
        %714 = vmatpush.msra.mxu0 0.0
        %715 = vmatpush.msra.mxu0 0.0
        %716 = vmatpush.msra.mxu0 0.0
        %717 = vmatpush.msra.mxu0 0.0
        %718 = vmatpush.msra.mxu0 0.0
        %719 = vmatpush.msra.mxu0 0.0
        %720 = vmatpush.msra.mxu0 0.0
        %721 = vmatpush.msra.mxu0 0.0
        %722 = vmatpush.msra.mxu0 0.0
        %723 = vmatpush.msra.mxu0 %v686
        %724 = vmatmul.f32.gmra.mxu0 %v681
        %v725 = vpop.f32.mrf.mxu0
        %v726 = vadd.f32 0.0, %v725
        %727 = vdwg.mxu0
        %728 = vst [vmem:[%s433 + $0x50] sm:$0xff] %v706
        %729 = vst [vmem:[%s433 + $0x58] sm:$0xff] %v726
        %v730 = vld [vmem:[%s7] sm:$0xff]
        %v731 = vld [vmem:[%s7 + $0x8] sm:$0xff]
        %v732 = vld [vmem:[%s7 + $0x10] sm:$0xff]
        %v733 = vld [vmem:[%s7 + $0x18] sm:$0xff]
        %v734 = vld [vmem:[%s7 + $0x20] sm:$0xff]
        %v735 = vld [vmem:[%s7 + $0x28] sm:$0xff]
        %v736 = vld [vmem:[%s7 + $0x30] sm:$0xff]
        %v737 = vld [vmem:[%s7 + $0x38] sm:$0xff]
        %v738 = vld [vmem:[%s7 + $0x40] sm:$0xff]
        %v739 = vld [vmem:[%s7 + $0x48] sm:$0xff]
        %v740 = vld [vmem:[%s7 + $0x50] sm:$0xff]
        %v741 = vld [vmem:[%s7 + $0x58] sm:$0xff]
        %v742 = vld [vmem:[%s7 + $0x60] sm:$0xff]
        %v743 = vld [vmem:[%s7 + $0x68] sm:$0xff]
        %v744 = vld [vmem:[%s7 + $0x70] sm:$0xff]
        %v745 = vld [vmem:[%s7 + $0x78] sm:$0xff]
        %v746 = vld [vmem:[%s7 + $0x80] sm:$0xff]
        %v747 = vld [vmem:[%s7 + $0x88] sm:$0xff]
        %v748 = vld [vmem:[%s7 + $0x90] sm:$0xff]
        %v749 = vld [vmem:[%s7 + $0x98] sm:$0xff]
        %v750 = vld [vmem:[%s7 + $0xa0] sm:$0xff]
        %v751 = vld [vmem:[%s7 + $0xa8] sm:$0xff]
        %v752 = vld [vmem:[%s7 + $0xb0] sm:$0xff]
        %v753 = vld [vmem:[%s7 + $0xb8] sm:$0xff]
        %v754 = vld [vmem:[%s7 + $0xc0] sm:$0xff]
        %v755 = vld [vmem:[%s7 + $0xc8] sm:$0xff]
        %v756 = vld [vmem:[%s7 + $0xd0] sm:$0xff]
        %v757 = vld [vmem:[%s7 + $0xd8] sm:$0xff]
        %v758 = vld [vmem:[%s7 + $0xe0] sm:$0xff]
        %v759 = vld [vmem:[%s7 + $0xe8] sm:$0xff]
        %v760 = vld [vmem:[%s7 + $0xf0] sm:$0xff]
        %v761 = vld [vmem:[%s7 + $0xf8] sm:$0xff]
        %762 = vmatpush.msra.mxu0 %v745
        %763 = vmatpush.msra.mxu0 %v744
        %764 = vmatpush.msra.mxu0 %v743
        %765 = vmatpush.msra.mxu0 %v742
        %766 = vmatpush.msra.mxu0 %v741
        %767 = vmatpush.msra.mxu0 %v740
        %768 = vmatpush.msra.mxu0 %v739
        %769 = vmatpush.msra.mxu0 %v738
        %770 = vmatpush.msra.mxu0 %v737
        %771 = vmatpush.msra.mxu0 %v736
        %772 = vmatpush.msra.mxu0 %v735
        %773 = vmatpush.msra.mxu0 %v734
        %774 = vmatpush.msra.mxu0 %v733
        %775 = vmatpush.msra.mxu0 %v732
        %776 = vmatpush.msra.mxu0 %v731
        %777 = vmatpush.msra.mxu0 %v730
        %778 = vmatmul.f32.gmra.mxu0 %v439
        %v779 = vpop.f32.mrf.mxu0
        %v780 = vadd.f32 0.0, %v779
        %781 = vmatmul.f32.gmra.mxu0 %v441
        %v782 = vpop.f32.mrf.mxu0
        %v783 = vadd.f32 0.0, %v782
        %784 = vmatmul.f32.gmra.mxu0 %v443
        %v785 = vpop.f32.mrf.mxu0
        %v786 = vadd.f32 0.0, %v785
        %787 = vmatmul.f32.gmra.mxu0 %v445
        %v788 = vpop.f32.mrf.mxu0
        %v789 = vadd.f32 0.0, %v788
        %790 = vdwg.mxu0
        %791 = vmatpush.msra.mxu0 %v761
        %792 = vmatpush.msra.mxu0 %v760
        %793 = vmatpush.msra.mxu0 %v759
        %794 = vmatpush.msra.mxu0 %v758
        %795 = vmatpush.msra.mxu0 %v757
        %796 = vmatpush.msra.mxu0 %v756
        %797 = vmatpush.msra.mxu0 %v755
        %798 = vmatpush.msra.mxu0 %v754
        %799 = vmatpush.msra.mxu0 %v753
        %800 = vmatpush.msra.mxu0 %v752
        %801 = vmatpush.msra.mxu0 %v751
        %802 = vmatpush.msra.mxu0 %v750
        %803 = vmatpush.msra.mxu0 %v749
        %804 = vmatpush.msra.mxu0 %v748
        %805 = vmatpush.msra.mxu0 %v747
        %806 = vmatpush.msra.mxu0 %v746
        %807 = vmatmul.f32.gmra.mxu0 %v440
        %v808 = vpop.f32.mrf.mxu0
        %v809 = vadd.f32 %v780, %v808
        %810 = vmatmul.f32.gmra.mxu0 %v442
        %v811 = vpop.f32.mrf.mxu0
        %v812 = vadd.f32 %v783, %v811
        %813 = vmatmul.f32.gmra.mxu0 %v444
        %v814 = vpop.f32.mrf.mxu0
        %v815 = vadd.f32 %v786, %v814
        %816 = vmatmul.f32.gmra.mxu0 %v446
        %v817 = vpop.f32.mrf.mxu0
        %v818 = vadd.f32 %v789, %v817
        %819 = vdwg.mxu0
        %v820 = vld [vmem:[%s8] sm:$0xff]
        %v821 = vld [vmem:[%s9] sm:$0xff]
        %v822 = vld [vmem:[%s9 + $0x8] sm:$0xff]
        %v823 = vld [vmem:[%s9 + $0x10] sm:$0x1]
        %v824 = vld [vmem:[%s9 + $0x18] sm:$0x1]
        %v826 = vsel %vm480, %v820, 0
        %828 = vmatpush.msra.mxu0 0.0
        %829 = vmatpush.msra.mxu0 0.0
        %830 = vmatpush.msra.mxu0 0.0
        %831 = vmatpush.msra.mxu0 0.0
        %832 = vmatpush.msra.mxu0 0.0
        %833 = vmatpush.msra.mxu0 0.0
        %834 = vmatpush.msra.mxu0 0.0
        %835 = vmatpush.msra.mxu0 0.0
        %836 = vmatpush.msra.mxu0 0.0
        %837 = vmatpush.msra.mxu0 0.0
        %838 = vmatpush.msra.mxu0 0.0
        %839 = vmatpush.msra.mxu0 0.0
        %840 = vmatpush.msra.mxu0 %v818
        %841 = vmatpush.msra.mxu0 %v815
        %842 = vmatpush.msra.mxu0 %v812
        %843 = vmatpush.msra.mxu0 %v809
        %844 = vmatmul.f32.gmra.mxu0 %v826
        %v845 = vpop.f32.mrf.mxu0
        %v846 = vadd.f32 0.0, %v845
        %847 = vdwg.mxu0
        %v848 = vmax.f32 %v846, 0.0
        %vm849 = vcmask 72704
        %v851 = vsel %vm849, %v848, 0
        %v854 = vsel %vm512, %v823, 0
        %v857 = vsel %vm512, %v824, 0
        %859 = vmatpush.msra.mxu0 0.0
        %860 = vmatpush.msra.mxu0 0.0
        %861 = vmatpush.msra.mxu0 0.0
        %862 = vmatpush.msra.mxu0 0.0
        %863 = vmatpush.msra.mxu0 0.0
        %864 = vmatpush.msra.mxu0 0.0
        %865 = vmatpush.msra.mxu0 0.0
        %866 = vmatpush.msra.mxu0 0.0
        %867 = vmatpush.msra.mxu0 0.0
        %868 = vmatpush.msra.mxu0 0.0
        %869 = vmatpush.msra.mxu0 0.0
        %870 = vmatpush.msra.mxu0 0.0
        %871 = vmatpush.msra.mxu0 0.0
        %872 = vmatpush.msra.mxu0 0.0
        %873 = vmatpush.msra.mxu0 %v854
        %874 = vmatpush.msra.mxu0 %v821
        %875 = vmatmul.f32.gmra.mxu0 %v851
        %v876 = vpop.f32.mrf.mxu0
        %v877 = vadd.f32 0.0, %v876
        %878 = vdwg.mxu0
        %879 = vmatpush.msra.mxu0 0.0
        %880 = vmatpush.msra.mxu0 0.0
        %881 = vmatpush.msra.mxu0 0.0
        %882 = vmatpush.msra.mxu0 0.0
        %883 = vmatpush.msra.mxu0 0.0
        %884 = vmatpush.msra.mxu0 0.0
        %885 = vmatpush.msra.mxu0 0.0
        %886 = vmatpush.msra.mxu0 0.0
        %887 = vmatpush.msra.mxu0 0.0
        %888 = vmatpush.msra.mxu0 0.0
        %889 = vmatpush.msra.mxu0 0.0
        %890 = vmatpush.msra.mxu0 0.0
        %891 = vmatpush.msra.mxu0 0.0
        %892 = vmatpush.msra.mxu0 0.0
        %893 = vmatpush.msra.mxu0 %v857
        %894 = vmatpush.msra.mxu0 %v822
        %895 = vmatmul.f32.gmra.mxu0 %v851
        %v896 = vpop.f32.mrf.mxu0
        %v897 = vadd.f32 0.0, %v896
        %898 = vdwg.mxu0
        %899 = vst [vmem:[%s433 + $0x60] sm:$0xff] %v877
        %900 = vst [vmem:[%s433 + $0x68] sm:$0xff] %v897
        %v901 = vld [vmem:[%s10] sm:$0xff]
        %v902 = vld [vmem:[%s10 + $0x8] sm:$0xff]
        %v903 = vld [vmem:[%s10 + $0x10] sm:$0xff]
        %v904 = vld [vmem:[%s10 + $0x18] sm:$0xff]
        %v905 = vld [vmem:[%s10 + $0x20] sm:$0xff]
        %v906 = vld [vmem:[%s10 + $0x28] sm:$0xff]
        %v907 = vld [vmem:[%s10 + $0x30] sm:$0xff]
        %v908 = vld [vmem:[%s10 + $0x38] sm:$0xff]
        %v909 = vld [vmem:[%s10 + $0x40] sm:$0xff]
        %v910 = vld [vmem:[%s10 + $0x48] sm:$0xff]
        %v911 = vld [vmem:[%s10 + $0x50] sm:$0xff]
        %v912 = vld [vmem:[%s10 + $0x58] sm:$0xff]
        %v913 = vld [vmem:[%s10 + $0x60] sm:$0xff]
        %v914 = vld [vmem:[%s10 + $0x68] sm:$0xff]
        %v915 = vld [vmem:[%s10 + $0x70] sm:$0xff]
        %v916 = vld [vmem:[%s10 + $0x78] sm:$0xff]
        %v917 = vld [vmem:[%s10 + $0x80] sm:$0xff]
        %v918 = vld [vmem:[%s10 + $0x88] sm:$0xff]
        %v919 = vld [vmem:[%s10 + $0x90] sm:$0xff]
        %v920 = vld [vmem:[%s10 + $0x98] sm:$0xff]
        %v921 = vld [vmem:[%s10 + $0xa0] sm:$0xff]
        %v922 = vld [vmem:[%s10 + $0xa8] sm:$0xff]
        %v923 = vld [vmem:[%s10 + $0xb0] sm:$0xff]
        %v924 = vld [vmem:[%s10 + $0xb8] sm:$0xff]
        %v925 = vld [vmem:[%s10 + $0xc0] sm:$0xff]
        %v926 = vld [vmem:[%s10 + $0xc8] sm:$0xff]
        %v927 = vld [vmem:[%s10 + $0xd0] sm:$0xff]
        %v928 = vld [vmem:[%s10 + $0xd8] sm:$0xff]
        %v929 = vld [vmem:[%s10 + $0xe0] sm:$0xff]
        %v930 = vld [vmem:[%s10 + $0xe8] sm:$0xff]
        %v931 = vld [vmem:[%s10 + $0xf0] sm:$0xff]
        %v932 = vld [vmem:[%s10 + $0xf8] sm:$0xff]
        %933 = vmatpush.msra.mxu0 %v916
        %934 = vmatpush.msra.mxu0 %v915
        %935 = vmatpush.msra.mxu0 %v914
        %936 = vmatpush.msra.mxu0 %v913
        %937 = vmatpush.msra.mxu0 %v912
        %938 = vmatpush.msra.mxu0 %v911
        %939 = vmatpush.msra.mxu0 %v910
        %940 = vmatpush.msra.mxu0 %v909
        %941 = vmatpush.msra.mxu0 %v908
        %942 = vmatpush.msra.mxu0 %v907
        %943 = vmatpush.msra.mxu0 %v906
        %944 = vmatpush.msra.mxu0 %v905
        %945 = vmatpush.msra.mxu0 %v904
        %946 = vmatpush.msra.mxu0 %v903
        %947 = vmatpush.msra.mxu0 %v902
        %948 = vmatpush.msra.mxu0 %v901
        %949 = vmatmul.f32.gmra.mxu0 %v439
        %v950 = vpop.f32.mrf.mxu0
        %v951 = vadd.f32 0.0, %v950
        %952 = vmatmul.f32.gmra.mxu0 %v441
        %v953 = vpop.f32.mrf.mxu0
        %v954 = vadd.f32 0.0, %v953
        %955 = vmatmul.f32.gmra.mxu0 %v443
        %v956 = vpop.f32.mrf.mxu0
        %v957 = vadd.f32 0.0, %v956
        %958 = vmatmul.f32.gmra.mxu0 %v445
        %v959 = vpop.f32.mrf.mxu0
        %v960 = vadd.f32 0.0, %v959
        %961 = vdwg.mxu0
        %962 = vmatpush.msra.mxu0 %v932
        %963 = vmatpush.msra.mxu0 %v931
        %964 = vmatpush.msra.mxu0 %v930
        %965 = vmatpush.msra.mxu0 %v929
        %966 = vmatpush.msra.mxu0 %v928
        %967 = vmatpush.msra.mxu0 %v927
        %968 = vmatpush.msra.mxu0 %v926
        %969 = vmatpush.msra.mxu0 %v925
        %970 = vmatpush.msra.mxu0 %v924
        %971 = vmatpush.msra.mxu0 %v923
        %972 = vmatpush.msra.mxu0 %v922
        %973 = vmatpush.msra.mxu0 %v921
        %974 = vmatpush.msra.mxu0 %v920
        %975 = vmatpush.msra.mxu0 %v919
        %976 = vmatpush.msra.mxu0 %v918
        %977 = vmatpush.msra.mxu0 %v917
        %978 = vmatmul.f32.gmra.mxu0 %v440
        %v979 = vpop.f32.mrf.mxu0
        %v980 = vadd.f32 %v951, %v979
        %981 = vmatmul.f32.gmra.mxu0 %v442
        %v982 = vpop.f32.mrf.mxu0
        %v983 = vadd.f32 %v954, %v982
        %984 = vmatmul.f32.gmra.mxu0 %v444
        %v985 = vpop.f32.mrf.mxu0
        %v986 = vadd.f32 %v957, %v985
        %987 = vmatmul.f32.gmra.mxu0 %v446
        %v988 = vpop.f32.mrf.mxu0
        %v989 = vadd.f32 %v960, %v988
        %990 = vdwg.mxu0
        %v991 = vld [vmem:[%s11] sm:$0xff]
        %v992 = vld [vmem:[%s12] sm:$0xff]
        %v993 = vld [vmem:[%s12 + $0x8] sm:$0xff]
        %v994 = vld [vmem:[%s12 + $0x10] sm:$0xff]
        %v995 = vld [vmem:[%s12 + $0x18] sm:$0xff]
        %v996 = vld [vmem:[%s12 + $0x20] sm:$0xff]
        %v997 = vld [vmem:[%s12 + $0x28] sm:$0xff]
        %v998 = vld [vmem:[%s12 + $0x30] sm:$0xff]
        %v999 = vld [vmem:[%s12 + $0x38] sm:$0xff]
        %v1000 = vld [vmem:[%s12 + $0x40] sm:$0xf]
        %v1001 = vld [vmem:[%s12 + $0x48] sm:$0xf]
        %v1003 = vsel %vm480, %v991, 0
        %1005 = vmatpush.msra.mxu0 0.0
        %1006 = vmatpush.msra.mxu0 0.0
        %1007 = vmatpush.msra.mxu0 0.0
        %1008 = vmatpush.msra.mxu0 0.0
        %1009 = vmatpush.msra.mxu0 0.0
        %1010 = vmatpush.msra.mxu0 0.0
        %1011 = vmatpush.msra.mxu0 0.0
        %1012 = vmatpush.msra.mxu0 0.0
        %1013 = vmatpush.msra.mxu0 0.0
        %1014 = vmatpush.msra.mxu0 0.0
        %1015 = vmatpush.msra.mxu0 0.0
        %1016 = vmatpush.msra.mxu0 0.0
        %1017 = vmatpush.msra.mxu0 %v989
        %1018 = vmatpush.msra.mxu0 %v986
        %1019 = vmatpush.msra.mxu0 %v983
        %1020 = vmatpush.msra.mxu0 %v980
        %1021 = vmatmul.f32.gmra.mxu0 %v1003
        %v1022 = vpop.f32.mrf.mxu0
        %v1023 = vadd.f32 0.0, %v1022
        %1024 = vdwg.mxu0
        %v1025 = vmax.f32 %v1023, 0.0
        %vm1026 = vcmask 293888
        %v1028 = vsel %vm1026, %v1025, 0
        %v1031 = vsel %vm683, %v1000, 0
        %v1034 = vsel %vm683, %v1001, 0
        %1036 = vmatpush.msra.mxu0 0.0
        %1037 = vmatpush.msra.mxu0 0.0
        %1038 = vmatpush.msra.mxu0 0.0
        %1039 = vmatpush.msra.mxu0 0.0
        %1040 = vmatpush.msra.mxu0 0.0
        %1041 = vmatpush.msra.mxu0 0.0
        %1042 = vmatpush.msra.mxu0 0.0
        %1043 = vmatpush.msra.mxu0 0.0
        %1044 = vmatpush.msra.mxu0 0.0
        %1045 = vmatpush.msra.mxu0 0.0
        %1046 = vmatpush.msra.mxu0 0.0
        %1047 = vmatpush.msra.mxu0 %v1031
        %1048 = vmatpush.msra.mxu0 %v998
        %1049 = vmatpush.msra.mxu0 %v996
        %1050 = vmatpush.msra.mxu0 %v994
        %1051 = vmatpush.msra.mxu0 %v992
        %1052 = vmatmul.f32.gmra.mxu0 %v1028
        %v1053 = vpop.f32.mrf.mxu0
        %v1054 = vadd.f32 0.0, %v1053
        %1055 = vdwg.mxu0
        %1056 = vmatpush.msra.mxu0 0.0
        %1057 = vmatpush.msra.mxu0 0.0
        %1058 = vmatpush.msra.mxu0 0.0
        %1059 = vmatpush.msra.mxu0 0.0
        %1060 = vmatpush.msra.mxu0 0.0
        %1061 = vmatpush.msra.mxu0 0.0
        %1062 = vmatpush.msra.mxu0 0.0
        %1063 = vmatpush.msra.mxu0 0.0
        %1064 = vmatpush.msra.mxu0 0.0
        %1065 = vmatpush.msra.mxu0 0.0
        %1066 = vmatpush.msra.mxu0 0.0
        %1067 = vmatpush.msra.mxu0 %v1034
        %1068 = vmatpush.msra.mxu0 %v999
        %1069 = vmatpush.msra.mxu0 %v997
        %1070 = vmatpush.msra.mxu0 %v995
        %1071 = vmatpush.msra.mxu0 %v993
        %1072 = vmatmul.f32.gmra.mxu0 %v1028
        %v1073 = vpop.f32.mrf.mxu0
        %v1074 = vadd.f32 0.0, %v1073
        %1075 = vdwg.mxu0
        %1076 = vst [vmem:[%s433 + $0x70] sm:$0xff] %v1054
        %1077 = vst [vmem:[%s433 + $0x78] sm:$0xff] %v1074
        %s1078 = sand.u32 %s313, 1
        %s1079 = scalar_lea.sflag [#allocation3], %s1078
        %s1080 = sand.u32 %s313, 1
        %s1081 = smul.addr %s1080, 128
        %s1082 = scalar_lea.vmem [#allocation2], %s1081
        // Predicated region
        $region73: #{tpu_custom_call.1} parent=71 // pred_check
          %p1083 = pneg %p323
        $region74: #{tpu_custom_call.1} parent=71 // pred_check_branch
          %1085 = sbr.rel (%p1083) target = $region76
        $region75: #{tpu_custom_call.1} parent=71 // pred_region
          %1087 = vsyncadd %s1079, 0
          %s1088 = smul.addr %s27, 16
          %s1089 = smul.addr %s1088, 8
          %s1090 = scalar_lea.hbm %s13, %s1089
          %s1091 = sshll.u32 %s1082, 4
          %s1092 = int_to_ptr.vmem [resolvable:$true] %s1091
          %s1093 = sshll.u32 %s1090, 4
          %s1094 = int_to_ptr.hbm [resolvable:$true] %s1093
          %1099 = dma.vmem_to_hbm [thread:$0]  %s1092, 2048, %s1094, %s1079, 256, 256, 16
        $region76: #{tpu_custom_call.1} parent=71 // pred_fallthru
          _
      $region72: #{tpu_custom_call.1} parent=5 // pred_fallthru
        _
      %p1100 = scmp.le.s32.totalorder 2, %s22
      // Predicated region
      $region77: #{tpu_custom_call.1} parent=5 // pred_check
        %p1101 = pneg %p1100
      $region78: #{tpu_custom_call.1} parent=5 // pred_check_branch
        %1103 = sbr.rel (%p1101) target = $region80
      $region79: #{tpu_custom_call.1} parent=5 // pred_region
        %s1104 = ssub.s32 %s22, 2
        // Predicated region
        $region81: #{tpu_custom_call.1} parent=79 // pred_check
          %p1105 = pneg %p329
        $region82: #{tpu_custom_call.1} parent=79 // pred_check_branch
          %1107 = sbr.rel (%p1105) target = $region84
        $region83: #{tpu_custom_call.1} parent=79 // pred_region
          %s1108 = sand.u32 %s314, 1
          %s1109 = scalar_lea.sflag [#allocation3], %s1108
          %s1110 = sand.u32 %s314, 1
          %s1111 = smul.addr %s1110, 128
          %s1112 = scalar_lea.vmem [#allocation2], %s1111
          %1114 = dma.done %s1109, 2048
        $region84: #{tpu_custom_call.1} parent=79 // pred_fallthru
          _
      $region80: #{tpu_custom_call.1} parent=5 // pred_fallthru
        _
    $region6: #{tpu_custom_call.1} parent=1 // loop_footer
      %s26 = sadd.s32 1, %s22
    $region7: #{tpu_custom_call.1} parent=1 // loop_footer_branch
      %21 = sbr.rel target = $region3
    $region8: #{tpu_custom_call.1} parent=1 // loop_exit
      _
    %1115 = vsyncpa [#allocation3], 1
    %s1116 = scalar_lea.sflag [#allocation3], 1
    %1117 = vsyncpa %s1116, 1

</llo_original>
